<compile_context>
chip_gen: v6e
topology: v6e:2x2x1
jax: 0.10.0
libtpu: 0.0.40
codegen_flags: <defaults>
</compile_context>

<pallas_src>
import functools

import jax
import jax.numpy as jnp
from jax.experimental import pallas as pl
from jax.experimental.pallas import tpu as pltpu


def _round_up(n, m):
    return ((n + m - 1) // m) * m


def _choose_tf(nframes, bs, k, feat, n_pad, n_w, x_bytes, w_bytes, out_bytes,
               target_rows=2048, vmem_budget=20 * 1024 * 1024):
    """Frame-tile size: multiple of 8 (output sublane constraint), ~target_rows
    matmul rows per step, fits a conservative VMEM budget, and keeps >= 2 grid
    blocks so the parallel frame axis can shard across v7x's 2 TensorCores."""
    if nframes <= 8:
        return nframes  # single block; block dim == full array dim is always legal
    best = 8
    for tf in range(8, nframes + 1, 8):
        rows = tf * bs
        work = (2 * rows * k * x_bytes            # double-buffered x tile
                + 2 * rows * feat * out_bytes     # double-buffered out tile
                + n_w * k * n_pad * w_bytes       # resident weights (single buffer)
                + n_w * n_pad * 4)                # resident bias
        if rows <= target_rows and work <= vmem_budget:
            best = tf
        else:
            break
    # keep at least 2 grid blocks (v7x megacore sharding); harmless elsewhere
    while best > 8 and pl.cdiv(nframes, best) < 2:
        best -= 8
    return best


def _fused_kernel(x_ref, w_ref, b_ref, o_ref, *, tf, bs, k, feat, n_w):
    """One grid step = `tf` frames for the whole batch.

    x_ref: (tf, bs, K)      frame-major input tile (pipelined / double-buffered)
    w_ref: (n_w, K, n_pad)  stacked, zero-padded weights (resident in VMEM)
    b_ref: (n_w, 1, n_pad)  stacked, zero-padded f32 biases (resident in VMEM)
    o_ref: (bs, tf, feat)   unpadded output tile, already permuted (batch, frame, feat)
    """
    f_blk = pl.program_id(0)

    # --- one big matmul per grid step ------------------------------------
    x2d = x_ref[...].reshape(tf * bs, k)                 # flatten (frame, batch) rows
    w_main = w_ref[n_w - 1]                              # static: vel (or pose if n_w==1)
    acc = jnp.dot(x2d, w_main, preferred_element_type=jnp.float32)
    acc = acc + b_ref[n_w - 1]                           # (1, n_pad) f32 broadcast, once
    acc = acc.astype(o_ref.dtype)                        # (tf*bs, n_pad)

    # --- scatter into the permuted output with tf static slice stores ----
    for t in range(tf):                                  # static unroll (stores only)
        o_ref[:, t, :] = acc[t * bs:(t + 1) * bs, :feat]

    # --- rot_vel: global frame 0 uses poseFinal; fix only on block 0 -----
    if n_w == 2:
        @pl.when(f_blk == 0)
        def _():
            acc0 = jnp.dot(x_ref[0], w_ref[0], preferred_element_type=jnp.float32)
            acc0 = acc0 + b_ref[0]
            o_ref[:, 0, :] = acc0.astype(o_ref.dtype)[:, :feat]


def _fused_output_linear(x, w_stack, b_stack, *, out_dtype, input_feats):
    """Per frame f: x[f] @ W[sel(f)] + b[sel(f)], written directly as
    (bs, nframes, input_feats) (i.e. already permuted, no lane padding)."""
    nframes, bs, k = x.shape
    n_w, _, n_pad = w_stack.shape

    x_bytes = jnp.dtype(x.dtype).itemsize
    w_bytes = jnp.dtype(w_stack.dtype).itemsize
    out_bytes = jnp.dtype(out_dtype).itemsize

    tf = _choose_tf(nframes, bs, k, input_feats, n_pad, n_w,
                    x_bytes, w_bytes, out_bytes)
    grid = (pl.cdiv(nframes, tf),)

    kernel = functools.partial(_fused_kernel, tf=tf, bs=bs, k=k,
                               feat=input_feats, n_w=n_w)

    m = nframes * bs
    cost = pl.CostEstimate(
        flops=2 * m * k * n_pad,
        transcendentals=0,
        bytes_accessed=(x_bytes * m * k
                        + w_bytes * n_w * k * n_pad
                        + 4 * n_w * n_pad
                        + out_bytes * m * input_feats),
    )

    return pl.pallas_call(
        kernel,
        out_shape=jax.ShapeDtypeStruct((bs, nframes, input_feats), out_dtype),
        grid=grid,
        in_specs=[
            # frame-tiled input: pipelined / double-buffered
            pl.BlockSpec((tf, bs, k), lambda f: (f, 0, 0)),
            # weights & bias: whole arrays resident in VMEM, fetched once
            pl.BlockSpec(memory_space=pltpu.MemorySpace.VMEM),
            pl.BlockSpec(memory_space=pltpu.MemorySpace.VMEM),
        ],
        # unpadded output, already in permuted (bs, frame, feat) layout
        out_specs=pl.BlockSpec((bs, tf, input_feats), lambda f: (0, f, 0)),
        compiler_params=pltpu.CompilerParams(
            dimension_semantics=("parallel",),
            vmem_limit_bytes=48 * 1024 * 1024),
        cost_estimate=cost,
    )(x, w_stack, b_stack)


def _pad_last(a, n_pad):
    n = a.shape[-1]
    if n == n_pad:
        return a
    pads = [(0, 0)] * (a.ndim - 1) + [(0, n_pad - n)]
    return jnp.pad(a, pads)


def output_process_forward(x_input, params, *, data_rep, njoints, nfeats,
                           compute_dtype=jnp.bfloat16):
    """Mirror of OutputProcess.forward.

    x_input: (nframes, bs, latent_dim) -> (bs, nframes, njoints, nfeats)
    """
    nframes, bs, _ = x_input.shape
    input_feats = njoints * nfeats
    n_pad = _round_up(input_feats, 128)

    # In a real model these padded/stacked params would be prepared once.
    if data_rep in ("rot6d", "xyz", "hml_vec"):
        w_stack = _pad_last(params["pose_w"], n_pad)[None]                # (1,K,Np)
        b_stack = _pad_last(params["pose_b"], n_pad)[None, None]          # (1,1,Np)
    elif data_rep == "rot_vel":
        w_stack = jnp.stack([_pad_last(params["pose_w"], n_pad),
                             _pad_last(params["vel_w"], n_pad)])          # (2,K,Np)
        b_stack = jnp.stack([_pad_last(params["pose_b"], n_pad),
                             _pad_last(params["vel_b"], n_pad)])[:, None]  # (2,1,Np)
    else:
        raise ValueError(data_rep)

    x_c = x_input.astype(compute_dtype)
    w_c = w_stack.astype(compute_dtype)
    b_c = b_stack.astype(jnp.float32)     # f32 bias add inside the kernel

    out3 = _fused_output_linear(x_c, w_c, b_c,
                                out_dtype=x_input.dtype,
                                input_feats=input_feats)
    # already permuted (bs, nframes, feat) and unpadded -> metadata-only reshape
    return out3.reshape(bs, nframes, njoints, nfeats)


def _reference_forward(x_input, params, *, data_rep, njoints, nfeats):
    """Pure-JAX reference (high-precision matmuls) for correctness checking."""
    hp = jax.lax.Precision.HIGHEST
    mm = lambda a, w: jnp.einsum("fbk,kn->fbn", a, w, precision=hp)
    nframes, bs, _ = x_input.shape
    if data_rep in ("rot6d", "xyz", "hml_vec"):
        output = mm(x_input, params["pose_w"]) + params["pose_b"]
    elif data_rep == "rot_vel":
        first = mm(x_input[0:1], params["pose_w"]) + params["pose_b"]
        vel = mm(x_input[1:], params["vel_w"]) + params["vel_b"]
        output = jnp.concatenate((first, vel), axis=0)
    else:
        raise ValueError(data_rep)
    output = output.reshape(nframes, bs, njoints, nfeats)
    return jnp.transpose(output, (1, 0, 2, 3))


def init_params(key, latent_dim, input_feats):
    """Deterministic synthetic params (nn.Linear-style).

    PyTorch nn.Linear weight is (out, in); we store the transpose (in, out)."""
    k1, k2, k3, k4 = jax.random.split(key, 4)
    bound = 1.0 / jnp.sqrt(latent_dim)
    return {
        "pose_w": jax.random.uniform(k1, (latent_dim, input_feats),
                                     jnp.float32, -bound, bound),
        "pose_b": jax.random.uniform(k2, (input_feats,),
                                     jnp.float32, -bound, bound),
        "vel_w": jax.random.uniform(k3, (latent_dim, input_feats),
                                    jnp.float32, -bound, bound),
        "vel_b": jax.random.uniform(k4, (input_feats,),
                                    jnp.float32, -bound, bound),
    }


if __name__ == "__main__":
    # small shapes consistent with the module
    nframes, bs, latent_dim = 8, 2, 32
    njoints, nfeats = 4, 3
    input_feats = njoints * nfeats  # 12

    key = jax.random.PRNGKey(0)
    kx, kp = jax.random.split(key)
    x_input = jax.random.normal(kx, (nframes, bs, latent_dim), jnp.float32)
    params = init_params(kp, latent_dim, input_feats)

    ok = True
    for data_rep in ("rot6d", "rot_vel"):
        ref = _reference_forward(x_input, params, data_rep=data_rep,
                                 njoints=njoints, nfeats=nfeats)
        for compute_dtype, tol in ((jnp.float32, 2e-2), (jnp.bfloat16, 8e-2)):
            fwd = jax.jit(functools.partial(
                output_process_forward, data_rep=data_rep,
                njoints=njoints, nfeats=nfeats, compute_dtype=compute_dtype))
            out = jax.block_until_ready(fwd(x_input, params))
            ok &= out.shape == (bs, nframes, njoints, nfeats)
            ok &= bool(jnp.allclose(out, ref, atol=tol, rtol=tol))

    if ok:
        print("KERNEL_OK")
    else:
        raise SystemExit("OutputProcess Pallas kernel mismatch vs reference")
</pallas_src>

<mosaic_0001>
module attributes {stable_mosaic.version = 11 : i64} {
  func.func @_fused_kernel(%arg0: i32, %arg1: memref<8x2x32xf32, #tpu.memory_space<vmem>>, %arg2: memref<1x32x128xf32, #tpu.memory_space<vmem>>, %arg3: memref<1x1x128xf32, #tpu.memory_space<vmem>>, %arg4: memref<2x8x12xf32, #tpu.memory_space<vmem>>) attributes {dimension_semantics = [#tpu.dimension_semantics<parallel>], iteration_bounds = array<i64: 1>, scalar_prefetch = 0 : i64, scratch_operands = 0 : i64, tpu.core_type = #tpu.core_type<tc>, window_params = [{transform_indices = @transform_0, window_bounds = array<i64: 8, 2, 32>}, {pipeline_mode = #tpu.pipeline_mode<synchronous>, transform_indices = @transform_1, window_bounds = array<i64: 1, 32, 128>}, {pipeline_mode = #tpu.pipeline_mode<synchronous>, transform_indices = @transform_2, window_bounds = array<i64: 1, 1, 128>}, {transform_indices = @transform_3, window_bounds = array<i64: 2, 8, 12>}]} {
    %c0 = arith.constant 0 : index
    %c0_0 = arith.constant 0 : index
    %c0_1 = arith.constant 0 : index
    %0 = vector.load %arg1[%c0, %c0_0, %c0_1] : memref<8x2x32xf32, #tpu.memory_space<vmem>>, vector<8x2x32xf32>
    %1 = vector.shape_cast %0 : vector<8x2x32xf32> to vector<16x32xf32>
    %c0_2 = arith.constant 0 : index
    %c0_3 = arith.constant 0 : index
    %c0_4 = arith.constant 0 : index
    %2 = vector.load %arg2[%c0_2, %c0_3, %c0_4] : memref<1x32x128xf32, #tpu.memory_space<vmem>>, vector<1x32x128xf32>
    %3 = vector.shape_cast %2 : vector<1x32x128xf32> to vector<32x128xf32>
    %cst = arith.constant dense<0.000000e+00> : vector<16x128xf32>
    %4 = tpu.matmul %1, %3, %cst {dimension_numbers = #tpu.dot_dimension_numbers<[1], [0], [0], [1], [0, 0, 1, 1], [], []>} : vector<16x32xf32>, vector<32x128xf32>, vector<16x128xf32> -> vector<16x128xf32>
    %c0_5 = arith.constant 0 : index
    %c0_6 = arith.constant 0 : index
    %c0_7 = arith.constant 0 : index
    %5 = vector.load %arg3[%c0_5, %c0_6, %c0_7] : memref<1x1x128xf32, #tpu.memory_space<vmem>>, vector<1x1x128xf32>
    %6 = vector.shape_cast %5 : vector<1x1x128xf32> to vector<1x128xf32>
    %7 = vector.broadcast %6 : vector<1x128xf32> to vector<16x128xf32>
    %8 = arith.addf %4, %7 : vector<16x128xf32>
    %9 = vector.extract_strided_slice %8 {offsets = [0, 0], sizes = [2, 12], strides = [1, 1]} : vector<16x128xf32> to vector<2x12xf32>
    %c0_8 = arith.constant 0 : index
    %c0_9 = arith.constant 0 : index
    %c0_10 = arith.constant 0 : index
    %10 = vector.load %arg4[%c0_8, %c0_9, %c0_10] : memref<2x8x12xf32, #tpu.memory_space<vmem>>, vector<2x1x12xf32>
    %11 = vector.shape_cast %10 : vector<2x1x12xf32> to vector<2x12xf32>
    %12 = vector.shape_cast %9 : vector<2x12xf32> to vector<2x1x12xf32>
    tpu.vector_store %arg4[%c0_8, %c0_9, %c0_10], %12 {strides = array<i32>} : memref<2x8x12xf32, #tpu.memory_space<vmem>>, vector<2x1x12xf32>,
    %13 = vector.extract_strided_slice %8 {offsets = [2, 0], sizes = [2, 12], strides = [1, 1]} : vector<16x128xf32> to vector<2x12xf32>
    %c0_11 = arith.constant 0 : index
    %c1 = arith.constant 1 : index
    %c0_12 = arith.constant 0 : index
    %14 = vector.load %arg4[%c0_11, %c1, %c0_12] : memref<2x8x12xf32, #tpu.memory_space<vmem>>, vector<2x1x12xf32>
    %15 = vector.shape_cast %14 : vector<2x1x12xf32> to vector<2x12xf32>
    %16 = vector.shape_cast %13 : vector<2x12xf32> to vector<2x1x12xf32>
    tpu.vector_store %arg4[%c0_11, %c1, %c0_12], %16 {strides = array<i32>} : memref<2x8x12xf32, #tpu.memory_space<vmem>>, vector<2x1x12xf32>,
    %17 = vector.extract_strided_slice %8 {offsets = [4, 0], sizes = [2, 12], strides = [1, 1]} : vector<16x128xf32> to vector<2x12xf32>
    %c0_13 = arith.constant 0 : index
    %c2 = arith.constant 2 : index
    %c0_14 = arith.constant 0 : index
    %18 = vector.load %arg4[%c0_13, %c2, %c0_14] : memref<2x8x12xf32, #tpu.memory_space<vmem>>, vector<2x1x12xf32>
    %19 = vector.shape_cast %18 : vector<2x1x12xf32> to vector<2x12xf32>
    %20 = vector.shape_cast %17 : vector<2x12xf32> to vector<2x1x12xf32>
    tpu.vector_store %arg4[%c0_13, %c2, %c0_14], %20 {strides = array<i32>} : memref<2x8x12xf32, #tpu.memory_space<vmem>>, vector<2x1x12xf32>,
    %21 = vector.extract_strided_slice %8 {offsets = [6, 0], sizes = [2, 12], strides = [1, 1]} : vector<16x128xf32> to vector<2x12xf32>
    %c0_15 = arith.constant 0 : index
    %c3 = arith.constant 3 : index
    %c0_16 = arith.constant 0 : index
    %22 = vector.load %arg4[%c0_15, %c3, %c0_16] : memref<2x8x12xf32, #tpu.memory_space<vmem>>, vector<2x1x12xf32>
    %23 = vector.shape_cast %22 : vector<2x1x12xf32> to vector<2x12xf32>
    %24 = vector.shape_cast %21 : vector<2x12xf32> to vector<2x1x12xf32>
    tpu.vector_store %arg4[%c0_15, %c3, %c0_16], %24 {strides = array<i32>} : memref<2x8x12xf32, #tpu.memory_space<vmem>>, vector<2x1x12xf32>,
    %25 = vector.extract_strided_slice %8 {offsets = [8, 0], sizes = [2, 12], strides = [1, 1]} : vector<16x128xf32> to vector<2x12xf32>
    %c0_17 = arith.constant 0 : index
    %c4 = arith.constant 4 : index
    %c0_18 = arith.constant 0 : index
    %26 = vector.load %arg4[%c0_17, %c4, %c0_18] : memref<2x8x12xf32, #tpu.memory_space<vmem>>, vector<2x1x12xf32>
    %27 = vector.shape_cast %26 : vector<2x1x12xf32> to vector<2x12xf32>
    %28 = vector.shape_cast %25 : vector<2x12xf32> to vector<2x1x12xf32>
    tpu.vector_store %arg4[%c0_17, %c4, %c0_18], %28 {strides = array<i32>} : memref<2x8x12xf32, #tpu.memory_space<vmem>>, vector<2x1x12xf32>,
    %29 = vector.extract_strided_slice %8 {offsets = [10, 0], sizes = [2, 12], strides = [1, 1]} : vector<16x128xf32> to vector<2x12xf32>
    %c0_19 = arith.constant 0 : index
    %c5 = arith.constant 5 : index
    %c0_20 = arith.constant 0 : index
    %30 = vector.load %arg4[%c0_19, %c5, %c0_20] : memref<2x8x12xf32, #tpu.memory_space<vmem>>, vector<2x1x12xf32>
    %31 = vector.shape_cast %30 : vector<2x1x12xf32> to vector<2x12xf32>
    %32 = vector.shape_cast %29 : vector<2x12xf32> to vector<2x1x12xf32>
    tpu.vector_store %arg4[%c0_19, %c5, %c0_20], %32 {strides = array<i32>} : memref<2x8x12xf32, #tpu.memory_space<vmem>>, vector<2x1x12xf32>,
    %33 = vector.extract_strided_slice %8 {offsets = [12, 0], sizes = [2, 12], strides = [1, 1]} : vector<16x128xf32> to vector<2x12xf32>
    %c0_21 = arith.constant 0 : index
    %c6 = arith.constant 6 : index
    %c0_22 = arith.constant 0 : index
    %34 = vector.load %arg4[%c0_21, %c6, %c0_22] : memref<2x8x12xf32, #tpu.memory_space<vmem>>, vector<2x1x12xf32>
    %35 = vector.shape_cast %34 : vector<2x1x12xf32> to vector<2x12xf32>
    %36 = vector.shape_cast %33 : vector<2x12xf32> to vector<2x1x12xf32>
    tpu.vector_store %arg4[%c0_21, %c6, %c0_22], %36 {strides = array<i32>} : memref<2x8x12xf32, #tpu.memory_space<vmem>>, vector<2x1x12xf32>,
    %37 = vector.extract_strided_slice %8 {offsets = [14, 0], sizes = [2, 12], strides = [1, 1]} : vector<16x128xf32> to vector<2x12xf32>
    %c0_23 = arith.constant 0 : index
    %c7 = arith.constant 7 : index
    %c0_24 = arith.constant 0 : index
    %38 = vector.load %arg4[%c0_23, %c7, %c0_24] : memref<2x8x12xf32, #tpu.memory_space<vmem>>, vector<2x1x12xf32>
    %39 = vector.shape_cast %38 : vector<2x1x12xf32> to vector<2x12xf32>
    %40 = vector.shape_cast %37 : vector<2x12xf32> to vector<2x1x12xf32>
    tpu.vector_store %arg4[%c0_23, %c7, %c0_24], %40 {strides = array<i32>} : memref<2x8x12xf32, #tpu.memory_space<vmem>>, vector<2x1x12xf32>,
    return
  }
  func.func @transform_0(%arg0: i32) -> (i32, i32, i32) {
    %c0_i32 = arith.constant 0 : i32
    %c0_i32_0 = arith.constant 0 : i32
    %c0_i32_1 = arith.constant 0 : i32
    return %arg0, %c0_i32, %c0_i32_0 : i32, i32, i32
  }
  func.func @transform_1(%arg0: i32) -> (i32, i32, i32) {
    %c0_i32 = arith.constant 0 : i32
    %c0_i32_0 = arith.constant 0 : i32
    %c0_i32_1 = arith.constant 0 : i32
    %c0_i32_2 = arith.constant 0 : i32
    return %c0_i32, %c0_i32_0, %c0_i32_1 : i32, i32, i32
  }
  func.func @transform_2(%arg0: i32) -> (i32, i32, i32) {
    %c0_i32 = arith.constant 0 : i32
    %c0_i32_0 = arith.constant 0 : i32
    %c0_i32_1 = arith.constant 0 : i32
    %c0_i32_2 = arith.constant 0 : i32
    return %c0_i32, %c0_i32_0, %c0_i32_1 : i32, i32, i32
  }
  func.func @transform_3(%arg0: i32) -> (i32, i32, i32) {
    %c0_i32 = arith.constant 0 : i32
    %c0_i32_0 = arith.constant 0 : i32
    %c0_i32_1 = arith.constant 0 : i32
    return %c0_i32, %arg0, %c0_i32_0 : i32, i32, i32
  }
}

</mosaic_0001>

<llo_original>
// kernel: output_process_forward.1
$region0: #{output_process_forward.1}
  #allocation0 [shape = 'u32[]', space=smem, size = 0x4, offset = 0x4, fixed_abs, tag = 'smem constant byte address 0x4 - core index']
  #allocation1 [shape = 'u32[144,128]{1,0:T(1,128)}', space=vmem, size = 0x12000, scoped, tag = 'internal scratch']
  %s0 = inlined_call_operand.vmem [shape: f32[8,2,32], index: 0, kind: input, shape index: {}]
  %s1 = inlined_call_operand.vmem [shape: f32[1,32,128], index: 1, kind: input, shape index: {}]
  %s2 = inlined_call_operand.vmem [shape: f32[1,1,128], index: 2, kind: input, shape index: {}]
  %s3 = inlined_call_operand.vmem [shape: f32[2,8,12], index: 3, kind: output, shape index: {}]
  %s4 = sld [smem:[#allocation0]]
  $region22: #{output_process_forward.1} parent=0
    _
  %s6 = ssub.s32 1, %s4
  %s7 = scalar_select 0, %s6, %s4
  // Predicated region
  $region2: #{output_process_forward.1} parent=0 // pred_check
    _
  $region3: #{output_process_forward.1} parent=0 // pred_check_branch
    %9 = sbr.rel (0) target = $region5
  $region4: #{output_process_forward.1} parent=0 // pred_region
    _
  $region5: #{output_process_forward.1} parent=0 // pred_fallthru
    _
  // Predicated region
  $region6: #{output_process_forward.1} parent=0 // pred_check
    _
  $region7: #{output_process_forward.1} parent=0 // pred_check_branch
    %11 = sbr.rel (0) target = $region9
  $region8: #{output_process_forward.1} parent=0 // pred_region
    _
  $region9: #{output_process_forward.1} parent=0 // pred_fallthru
    _
  // Predicated region
  $region10: #{output_process_forward.1} parent=0 // pred_check
    _
  $region11: #{output_process_forward.1} parent=0 // pred_check_branch
    %13 = sbr.rel (0) target = $region13
  $region12: #{output_process_forward.1} parent=0 // pred_region
    _
  $region13: #{output_process_forward.1} parent=0 // pred_fallthru
    _
  %v14 = vld [vmem:[%s0] sm:$0x3]
  %v15 = vld [vmem:[%s0 + $0x2] sm:$0x3]
  %v16 = vld [vmem:[%s0 + $0x4] sm:$0x3]
  %v17 = vld [vmem:[%s0 + $0x6] sm:$0x3]
  %v18 = vld [vmem:[%s0 + $0x8] sm:$0x3]
  %v19 = vld [vmem:[%s0 + $0xa] sm:$0x3]
  %v20 = vld [vmem:[%s0 + $0xc] sm:$0x3]
  %v21 = vld [vmem:[%s0 + $0xe] sm:$0x3]
  %v22 = vld [vmem:[%s1] sm:$0xff]
  %v23 = vld [vmem:[%s1 + $0x8] sm:$0xff]
  %v24 = vld [vmem:[%s1 + $0x10] sm:$0xff]
  %v25 = vld [vmem:[%s1 + $0x18] sm:$0xff]
  %v26 = vld [vmem:[%s2] sm:$0x1]
  %v28 = vlaneseq
  %v29 = vshrl.u32 %v28, 7
  %v30 = vsub.s32 0, %v29
  %v31 = vrot.slane %v26, %v30
  %v41 = vcombine.low %v14, %v15
  %v42 = vcombine.low %v16, %v17
  %v44 = vunpack.c.l.s4 1983009808
  %v45 = vunpack.c.0.s8 %v44
  %v46 = vlaneseq
  %v47 = vshrl.u32 %v46, 7
  %v48 = vsub.s32 %v45, %v47
  %v49 = vrot.slane %v41, %v48
  %v51 = vunpack.c.l.s4 1983009808
  %v52 = vunpack.c.0.s8 %v51
  %v53 = vlaneseq
  %v54 = vshrl.u32 %v53, 7
  %v55 = vsub.s32 %v52, %v54
  %v56 = vrot.slane %v42, %v55
  %v57 = vcombine.low %v49, %v56
  %v58 = vcombine.low %v18, %v19
  %v59 = vcombine.low %v20, %v21
  %v61 = vunpack.c.l.s4 1983009808
  %v62 = vunpack.c.0.s8 %v61
  %v63 = vlaneseq
  %v64 = vshrl.u32 %v63, 7
  %v65 = vsub.s32 %v62, %v64
  %v66 = vrot.slane %v58, %v65
  %v68 = vunpack.c.l.s4 1983009808
  %v69 = vunpack.c.0.s8 %v68
  %v70 = vlaneseq
  %v71 = vshrl.u32 %v70, 7
  %v72 = vsub.s32 %v69, %v71
  %v73 = vrot.slane %v59, %v72
  %v74 = vcombine.low %v66, %v73
  %vm75 = vcmask 261120
  %v76 = vsel %vm75, %v57, 0
  %v78 = vsel %vm75, %v74, 0
  %80 = vmatprep.subr.mxu0 0.0
  %81 = vmatpush1.msra.mxu0 0.0
  %82 = vmatprep.subr.mxu0 0.0
  %83 = vmatpush1.msra.mxu0 0.0
  %84 = vmatprep.subr.mxu0 0.0
  %85 = vmatpush1.msra.mxu0 0.0
  %86 = vmatprep.subr.mxu0 0.0
  %87 = vmatpush1.msra.mxu0 0.0
  %88 = vmatprep.subr.mxu0 0.0
  %89 = vmatpush1.msra.mxu0 0.0
  %90 = vmatprep.subr.mxu0 0.0
  %91 = vmatpush1.msra.mxu0 0.0
  %92 = vmatprep.subr.mxu0 0.0
  %93 = vmatpush1.msra.mxu0 0.0
  %94 = vmatprep.subr.mxu0 0.0
  %95 = vmatpush1.msra.mxu0 0.0
  %96 = vmatprep.subr.mxu0 0.0
  %97 = vmatpush1.msra.mxu0 0.0
  %98 = vmatprep.subr.mxu0 0.0
  %99 = vmatpush1.msra.mxu0 0.0
  %100 = vmatprep.subr.mxu0 0.0
  %101 = vmatpush1.msra.mxu0 0.0
  %102 = vmatprep.subr.mxu0 0.0
  %103 = vmatpush1.msra.mxu0 0.0
  %104 = vmatprep.subr.mxu0 0.0
  %105 = vmatpush1.msra.mxu0 %v25
  %106 = vmatprep.subr.mxu0 0.0
  %107 = vmatpush1.msra.mxu0 %v24
  %108 = vmatprep.subr.mxu0 0.0
  %109 = vmatpush1.msra.mxu0 %v23
  %110 = vmatprep.subr.mxu0 0.0
  %111 = vmatpush1.msra.mxu0 %v22
  %112 = vmatprep.subr.mxu0 0.0
  %113 = vmatpush2.msra.mxu0 0.0
  %114 = vmatprep.subr.mxu0 0.0
  %115 = vmatpush2.msra.mxu0 0.0
  %116 = vmatprep.subr.mxu0 0.0
  %117 = vmatpush2.msra.mxu0 0.0
  %118 = vmatprep.subr.mxu0 0.0
  %119 = vmatpush2.msra.mxu0 0.0
  %120 = vmatprep.subr.mxu0 0.0
  %121 = vmatpush2.msra.mxu0 0.0
  %122 = vmatprep.subr.mxu0 0.0
  %123 = vmatpush2.msra.mxu0 0.0
  %124 = vmatprep.subr.mxu0 0.0
  %125 = vmatpush2.msra.mxu0 0.0
  %126 = vmatprep.subr.mxu0 0.0
  %127 = vmatpush2.msra.mxu0 0.0
  %128 = vmatprep.subr.mxu0 0.0
  %129 = vmatpush2.msra.mxu0 0.0
  %130 = vmatprep.subr.mxu0 0.0
  %131 = vmatpush2.msra.mxu0 0.0
  %132 = vmatprep.subr.mxu0 0.0
  %133 = vmatpush2.msra.mxu0 0.0
  %134 = vmatprep.subr.mxu0 0.0
  %135 = vmatpush2.msra.mxu0 0.0
  %136 = vmatprep.subr.mxu0 0.0
  %137 = vmatpush2.msra.mxu0 0.0
  %138 = vmatprep.subr.mxu0 0.0
  %139 = vmatpush2.msra.mxu0 0.0
  %140 = vmatprep.subr.mxu0 0.0
  %141 = vmatpush2.msra.mxu0 0.0
  %142 = vmatprep.subr.mxu0 0.0
  %143 = vmatpush2.msra.mxu0 0.0
  %144 = vmatprep.mubr.f32.mxu0 0.0
  %145 = vmatmul.mubr.f32.gmra.mxu0 %v76
  %v146 = vpop.f32.mrf.mxu0
  %v147 = vadd.f32 %v31, %v146
  %v148 = vpop.f32.mrf.mxu0
  %149 = vmatprep.mubr.f32.mxu0 0.0
  %150 = vmatmul.mubr.f32.gmra.mxu0 %v78
  %v151 = vpop.f32.mrf.mxu0
  %v152 = vadd.f32 %v31, %v151
  %v153 = vpop.f32.mrf.mxu0
  %154 = vdwg.mxu0
  %v157 = vunpack.c.l.s4 1966171168
  %v158 = vunpack.c.0.s8 %v157
  %v159 = vlaneseq
  %v160 = vshrl.u32 %v159, 7
  %v161 = vsub.s32 %v158, %v160
  %v162 = vrot.slane %v147, %v161
  %v163 = vcombine.high %v162, %v162
  %v165 = vunpack.c.l.s4 1966171168
  %v166 = vunpack.c.0.s8 %v165
  %v167 = vlaneseq
  %v168 = vshrl.u32 %v167, 7
  %v169 = vsub.s32 %v166, %v168
  %v170 = vrot.slane %v162, %v169
  %v172 = vunpack.c.l.s4 1966171168
  %v173 = vunpack.c.0.s8 %v172
  %v174 = vlaneseq
  %v175 = vshrl.u32 %v174, 7
  %v176 = vsub.s32 %v173, %v175
  %v177 = vrot.slane %v163, %v176
  %vm180 = vcmask 90112
  %181 = vst.msk [vmem:[%s3] sm:$0x1] %vm180, %v170
  %182 = vst.msk [vmem:[%s3 + $0x8] sm:$0x1] %vm180, %v177
  %v183 = vcombine.high %v170, %v170
  %v184 = vcombine.high %v177, %v177
  %187 = vst.msk [vmem:[%s3 + $0x1] sm:$0x1] %vm180, %v183
  %188 = vst.msk [vmem:[%s3 + $0x9] sm:$0x1] %vm180, %v184
  %v189 = vcombine.high %v147, %v147
  %v191 = vunpack.c.l.s4 1966171168
  %v192 = vunpack.c.0.s8 %v191
  %v193 = vlaneseq
  %v194 = vshrl.u32 %v193, 7
  %v195 = vsub.s32 %v192, %v194
  %v196 = vrot.slane %v189, %v195
  %v197 = vcombine.high %v196, %v196
  %v199 = vunpack.c.l.s4 1966171168
  %v200 = vunpack.c.0.s8 %v199
  %v201 = vlaneseq
  %v202 = vshrl.u32 %v201, 7
  %v203 = vsub.s32 %v200, %v202
  %v204 = vrot.slane %v196, %v203
  %v206 = vunpack.c.l.s4 1966171168
  %v207 = vunpack.c.0.s8 %v206
  %v208 = vlaneseq
  %v209 = vshrl.u32 %v208, 7
  %v210 = vsub.s32 %v207, %v209
  %v211 = vrot.slane %v197, %v210
  %214 = vst.msk [vmem:[%s3 + $0x2] sm:$0x1] %vm180, %v204
  %215 = vst.msk [vmem:[%s3 + $0xa] sm:$0x1] %vm180, %v211
  %v216 = vcombine.high %v204, %v204
  %v217 = vcombine.high %v211, %v211
  %220 = vst.msk [vmem:[%s3 + $0x3] sm:$0x1] %vm180, %v216
  %221 = vst.msk [vmem:[%s3 + $0xb] sm:$0x1] %vm180, %v217
  %v224 = vunpack.c.l.s4 1966171168
  %v225 = vunpack.c.0.s8 %v224
  %v226 = vlaneseq
  %v227 = vshrl.u32 %v226, 7
  %v228 = vsub.s32 %v225, %v227
  %v229 = vrot.slane %v152, %v228
  %v230 = vcombine.high %v229, %v229
  %v232 = vunpack.c.l.s4 1966171168
  %v233 = vunpack.c.0.s8 %v232
  %v234 = vlaneseq
  %v235 = vshrl.u32 %v234, 7
  %v236 = vsub.s32 %v233, %v235
  %v237 = vrot.slane %v229, %v236
  %v239 = vunpack.c.l.s4 1966171168
  %v240 = vunpack.c.0.s8 %v239
  %v241 = vlaneseq
  %v242 = vshrl.u32 %v241, 7
  %v243 = vsub.s32 %v240, %v242
  %v244 = vrot.slane %v230, %v243
  %247 = vst.msk [vmem:[%s3 + $0x4] sm:$0x1] %vm180, %v237
  %248 = vst.msk [vmem:[%s3 + $0xc] sm:$0x1] %vm180, %v244
  %v249 = vcombine.high %v237, %v237
  %v250 = vcombine.high %v244, %v244
  %253 = vst.msk [vmem:[%s3 + $0x5] sm:$0x1] %vm180, %v249
  %254 = vst.msk [vmem:[%s3 + $0xd] sm:$0x1] %vm180, %v250
  %v255 = vcombine.high %v152, %v152
  %v257 = vunpack.c.l.s4 1966171168
  %v258 = vunpack.c.0.s8 %v257
  %v259 = vlaneseq
  %v260 = vshrl.u32 %v259, 7
  %v261 = vsub.s32 %v258, %v260
  %v262 = vrot.slane %v255, %v261
  %v263 = vcombine.high %v262, %v262
  %v265 = vunpack.c.l.s4 1966171168
  %v266 = vunpack.c.0.s8 %v265
  %v267 = vlaneseq
  %v268 = vshrl.u32 %v267, 7
  %v269 = vsub.s32 %v266, %v268
  %v270 = vrot.slane %v262, %v269
  %v272 = vunpack.c.l.s4 1966171168
  %v273 = vunpack.c.0.s8 %v272
  %v274 = vlaneseq
  %v275 = vshrl.u32 %v274, 7
  %v276 = vsub.s32 %v273, %v275
  %v277 = vrot.slane %v263, %v276
  %280 = vst.msk [vmem:[%s3 + $0x6] sm:$0x1] %vm180, %v270
  %281 = vst.msk [vmem:[%s3 + $0xe] sm:$0x1] %vm180, %v277
  %v282 = vcombine.high %v270, %v270
  %v283 = vcombine.high %v277, %v277
  %286 = vst.msk [vmem:[%s3 + $0x7] sm:$0x1] %vm180, %v282
  %287 = vst.msk [vmem:[%s3 + $0xf] sm:$0x1] %vm180, %v283
  // Predicated region
  $region14: #{output_process_forward.1} parent=0 // pred_check
    _
  $region15: #{output_process_forward.1} parent=0 // pred_check_branch
    %289 = sbr.rel (0) target = $region17
  $region16: #{output_process_forward.1} parent=0 // pred_region
    _
  $region17: #{output_process_forward.1} parent=0 // pred_fallthru
    _
  // Predicated region
  $region18: #{output_process_forward.1} parent=0 // pred_check
    _
  $region19: #{output_process_forward.1} parent=0 // pred_check_branch
    %291 = sbr.rel (0) target = $region21
  $region20: #{output_process_forward.1} parent=0 // pred_region
    _
  $region21: #{output_process_forward.1} parent=0 // pred_fallthru
    _

</llo_original>
